<compile_context>
chip_gen: v7x
topology: tpu7x:2x2x1
jax: 0.10.0
libtpu: 0.0.40
codegen_flags: <defaults>
</compile_context>

<pallas_src>
import jax
import jax.numpy as jnp
from jax.experimental import pallas as pl
from jax.experimental.pallas import tpu as pltpu


def _normalize_kernel(x_ref, mean_ref, inv_std_ref, o_ref):
    # x_ref / o_ref : (1, C, TILE_R, LANES) blocks (o_ref is float32)
    # mean_ref / inv_std_ref : (C,) float32 scalars in SMEM
    c = x_ref.shape[1]
    for ci in range(c):  # C == 3: static unroll; SMEM scalars fold into VPU ops
        plane = x_ref[0, ci].astype(jnp.float32)          # dense (TILE_R, LANES)
        o_ref[0, ci] = (plane - mean_ref[ci]) * inv_std_ref[ci]


@jax.jit
def mmseg_normalize(x: jax.Array, mean: jax.Array, std: jax.Array) -> jax.Array:
    """Pallas implementation of (x - mean) / std with NCHW per-channel broadcast.

    Output is always float32 (matches PyTorch promotion against f32 buffers).
    """
    n, c, h, w = x.shape
    mean = jnp.asarray(mean, jnp.float32).reshape(c)
    inv_std = (1.0 / jnp.asarray(std, jnp.float32)).reshape(c)

    # ---- choose a lane-dense working layout (free row-major reshape) -------
    hw = h * w
    if w % 128 == 0 or hw % 128 != 0:
        rows, lanes = h, w                 # already lane-dense, or fallback
    else:
        rows, lanes = hw // 128, 128       # repack narrow widths to full lanes
    x_work = x.reshape(n, c, rows, lanes)

    # ---- row tiling: ~2 MiB f32 per block ----------------------------------
    # in + out, each double-buffered -> ~8 MiB VMEM, under the 16/32 MiB
    # scoped defaults, so no vmem_limit_bytes override is needed.
    target_block_bytes = 2 * 1024 * 1024
    bytes_per_row = c * lanes * 4
    tile_rows = max(8, (target_block_bytes // bytes_per_row) // 8 * 8)
    if tile_rows >= rows:
        tile_rows = rows                   # one tile; full-dim blocks are exempt
                                           # from the /8 sublane rule

    grid = (n, pl.cdiv(rows, tile_rows))
    block = (1, c, tile_rows, lanes)

    x_spec = pl.BlockSpec(block, lambda i, j: (i, 0, j, 0))
    o_spec = pl.BlockSpec(block, lambda i, j: (i, 0, j, 0))
    smem_spec = pl.BlockSpec(memory_space=pltpu.MemorySpace.SMEM)

    out = pl.pallas_call(
        _normalize_kernel,
        out_shape=jax.ShapeDtypeStruct((n, c, rows, lanes), jnp.float32),
        grid_spec=pltpu.PrefetchScalarGridSpec(
            num_scalar_prefetch=0,
            grid=grid,
            in_specs=[x_spec, smem_spec, smem_spec],
            out_specs=o_spec,
        ),
        compiler_params=pltpu.CompilerParams(
            # Both axes independent -> megacore can split spatial tiles on
            # multi-TC chips even with batch size 1.
            dimension_semantics=("parallel", "parallel"),
        ),
    )(x_work, mean, inv_std)
    return out.reshape(n, c, h, w)


class MMSegNormalizerPallas:
    """JAX/Pallas analogue of the PyTorch MMSegNormalizer module."""

    def __init__(self, mean, std):
        self.mean = jnp.asarray(mean, dtype=jnp.float32)
        self.std = jnp.asarray(std, dtype=jnp.float32)

    def __call__(self, inputs: jax.Array) -> jax.Array:
        normalized_inputs = mmseg_normalize(inputs, self.mean, self.std)
        # Metadata mirrors the PyTorch forward (not consumed by the kernel).
        ori_shape = tuple(inputs.shape[-2:]) + (inputs.shape[1],)
        img_metas = dict(ori_shape=ori_shape, img_shape=tuple(inputs.shape[-2:]))
        del img_metas
        # TODO(synk): self.model.inference(...) wraps an arbitrary mmseg
        # EncoderDecoder network; no concrete architecture is given, so it is
        # not translated. The normalized tensor (this module's own compute) is
        # returned; ideally this normalize would be fused into the model's
        # first conv to avoid a dedicated read+write pass over the image.
        return normalized_inputs


if __name__ == "__main__":
    key = jax.random.PRNGKey(0)
    N, C, H, W = 2, 3, 16, 16  # module is fixed to 3 channels (mean/std tuples)
    x = jax.random.uniform(key, (N, C, H, W), dtype=jnp.float32) * 255.0

    # Deterministic "buffers" (standard ImageNet stats, as mmseg commonly uses).
    mean = (123.675, 116.28, 103.53)
    std = (58.395, 57.12, 57.375)

    normalizer = MMSegNormalizerPallas(mean, std)
    out = jax.block_until_ready(normalizer(x))

    # Reference check in plain JAX.
    ref = (x - jnp.asarray(mean, jnp.float32).reshape(1, 3, 1, 1)) / jnp.asarray(
        std, jnp.float32
    ).reshape(1, 3, 1, 1)
    assert out.shape == x.shape
    assert out.dtype == jnp.float32
    assert jnp.allclose(out, ref, atol=1e-5, rtol=1e-5)
    print("KERNEL_OK")
</pallas_src>

<mosaic_0001>
module attributes {stable_mosaic.version = 11 : i64} {
  func.func @_normalize_kernel(%arg0: i32, %arg1: i32, %arg2: memref<1x3x2x128xf32, #tpu.memory_space<vmem>>, %arg3: memref<3xf32, #tpu.memory_space<smem>>, %arg4: memref<3xf32, #tpu.memory_space<smem>>, %arg5: memref<1x3x2x128xf32, #tpu.memory_space<vmem>>) attributes {dimension_semantics = [#tpu.dimension_semantics<parallel>, #tpu.dimension_semantics<parallel>], iteration_bounds = array<i64: 2, 1>, scalar_prefetch = 0 : i64, scratch_operands = 0 : i64, tpu.core_type = #tpu.core_type<tc>, window_params = [{transform_indices = @transform_0, window_bounds = array<i64: 1, 3, 2, 128>}, {transform_indices = @transform_1, window_bounds = array<i64: 3>}, {transform_indices = @transform_2, window_bounds = array<i64: 3>}, {transform_indices = @transform_3, window_bounds = array<i64: 1, 3, 2, 128>}]} {
    %c0 = arith.constant 0 : index
    %c0_0 = arith.constant 0 : index
    %c0_1 = arith.constant 0 : index
    %c0_2 = arith.constant 0 : index
    %0 = vector.load %arg2[%c0, %c0_0, %c0_1, %c0_2] : memref<1x3x2x128xf32, #tpu.memory_space<vmem>>, vector<1x1x2x128xf32>
    %1 = vector.shape_cast %0 : vector<1x1x2x128xf32> to vector<2x128xf32>
    %c0_3 = arith.constant 0 : index
    %2 = memref.load %arg3[%c0_3] : memref<3xf32, #tpu.memory_space<smem>>
    %3 = vector.broadcast %2 : f32 to vector<2x128xf32>
    %4 = arith.subf %1, %3 : vector<2x128xf32>
    %c0_4 = arith.constant 0 : index
    %5 = memref.load %arg4[%c0_4] : memref<3xf32, #tpu.memory_space<smem>>
    %6 = vector.broadcast %5 : f32 to vector<2x128xf32>
    %7 = arith.mulf %4, %6 : vector<2x128xf32>
    %c0_5 = arith.constant 0 : index
    %c0_6 = arith.constant 0 : index
    %c0_7 = arith.constant 0 : index
    %c0_8 = arith.constant 0 : index
    %8 = vector.load %arg5[%c0_5, %c0_6, %c0_7, %c0_8] : memref<1x3x2x128xf32, #tpu.memory_space<vmem>>, vector<1x1x2x128xf32>
    %9 = vector.shape_cast %8 : vector<1x1x2x128xf32> to vector<2x128xf32>
    %10 = vector.shape_cast %7 : vector<2x128xf32> to vector<1x1x2x128xf32>
    tpu.vector_store %arg5[%c0_5, %c0_6, %c0_7, %c0_8], %10 {strides = array<i32>} : memref<1x3x2x128xf32, #tpu.memory_space<vmem>>, vector<1x1x2x128xf32>,
    %c0_9 = arith.constant 0 : index
    %c1 = arith.constant 1 : index
    %c0_10 = arith.constant 0 : index
    %c0_11 = arith.constant 0 : index
    %11 = vector.load %arg2[%c0_9, %c1, %c0_10, %c0_11] : memref<1x3x2x128xf32, #tpu.memory_space<vmem>>, vector<1x1x2x128xf32>
    %12 = vector.shape_cast %11 : vector<1x1x2x128xf32> to vector<2x128xf32>
    %c1_12 = arith.constant 1 : index
    %13 = memref.load %arg3[%c1_12] : memref<3xf32, #tpu.memory_space<smem>>
    %14 = vector.broadcast %13 : f32 to vector<2x128xf32>
    %15 = arith.subf %12, %14 : vector<2x128xf32>
    %c1_13 = arith.constant 1 : index
    %16 = memref.load %arg4[%c1_13] : memref<3xf32, #tpu.memory_space<smem>>
    %17 = vector.broadcast %16 : f32 to vector<2x128xf32>
    %18 = arith.mulf %15, %17 : vector<2x128xf32>
    %c0_14 = arith.constant 0 : index
    %c1_15 = arith.constant 1 : index
    %c0_16 = arith.constant 0 : index
    %c0_17 = arith.constant 0 : index
    %19 = vector.load %arg5[%c0_14, %c1_15, %c0_16, %c0_17] : memref<1x3x2x128xf32, #tpu.memory_space<vmem>>, vector<1x1x2x128xf32>
    %20 = vector.shape_cast %19 : vector<1x1x2x128xf32> to vector<2x128xf32>
    %21 = vector.shape_cast %18 : vector<2x128xf32> to vector<1x1x2x128xf32>
    tpu.vector_store %arg5[%c0_14, %c1_15, %c0_16, %c0_17], %21 {strides = array<i32>} : memref<1x3x2x128xf32, #tpu.memory_space<vmem>>, vector<1x1x2x128xf32>,
    %c0_18 = arith.constant 0 : index
    %c2 = arith.constant 2 : index
    %c0_19 = arith.constant 0 : index
    %c0_20 = arith.constant 0 : index
    %22 = vector.load %arg2[%c0_18, %c2, %c0_19, %c0_20] : memref<1x3x2x128xf32, #tpu.memory_space<vmem>>, vector<1x1x2x128xf32>
    %23 = vector.shape_cast %22 : vector<1x1x2x128xf32> to vector<2x128xf32>
    %c2_21 = arith.constant 2 : index
    %24 = memref.load %arg3[%c2_21] : memref<3xf32, #tpu.memory_space<smem>>
    %25 = vector.broadcast %24 : f32 to vector<2x128xf32>
    %26 = arith.subf %23, %25 : vector<2x128xf32>
    %c2_22 = arith.constant 2 : index
    %27 = memref.load %arg4[%c2_22] : memref<3xf32, #tpu.memory_space<smem>>
    %28 = vector.broadcast %27 : f32 to vector<2x128xf32>
    %29 = arith.mulf %26, %28 : vector<2x128xf32>
    %c0_23 = arith.constant 0 : index
    %c2_24 = arith.constant 2 : index
    %c0_25 = arith.constant 0 : index
    %c0_26 = arith.constant 0 : index
    %30 = vector.load %arg5[%c0_23, %c2_24, %c0_25, %c0_26] : memref<1x3x2x128xf32, #tpu.memory_space<vmem>>, vector<1x1x2x128xf32>
    %31 = vector.shape_cast %30 : vector<1x1x2x128xf32> to vector<2x128xf32>
    %32 = vector.shape_cast %29 : vector<2x128xf32> to vector<1x1x2x128xf32>
    tpu.vector_store %arg5[%c0_23, %c2_24, %c0_25, %c0_26], %32 {strides = array<i32>} : memref<1x3x2x128xf32, #tpu.memory_space<vmem>>, vector<1x1x2x128xf32>,
    return
  }
  func.func @transform_0(%arg0: i32, %arg1: i32) -> (i32, i32, i32, i32) {
    %c0_i32 = arith.constant 0 : i32
    %c0_i32_0 = arith.constant 0 : i32
    %c0_i32_1 = arith.constant 0 : i32
    return %arg0, %c0_i32, %arg1, %c0_i32_0 : i32, i32, i32, i32
  }
  func.func @transform_1(%arg0: i32, %arg1: i32) -> i32 {
    %c0_i32 = arith.constant 0 : i32
    %c0_i32_0 = arith.constant 0 : i32
    return %c0_i32 : i32
  }
  func.func @transform_2(%arg0: i32, %arg1: i32) -> i32 {
    %c0_i32 = arith.constant 0 : i32
    %c0_i32_0 = arith.constant 0 : i32
    return %c0_i32 : i32
  }
  func.func @transform_3(%arg0: i32, %arg1: i32) -> (i32, i32, i32, i32) {
    %c0_i32 = arith.constant 0 : i32
    %c0_i32_0 = arith.constant 0 : i32
    %c0_i32_1 = arith.constant 0 : i32
    return %arg0, %c0_i32, %arg1, %c0_i32_0 : i32, i32, i32, i32
  }
}

</mosaic_0001>

<llo_original>
// kernel: mmseg_normalize.1
$region0: #{mmseg_normalize.1}
  #allocation0 [shape = 'u32[]', space=smem, size = 0x4, offset = 0x4, fixed_abs, tag = 'smem constant byte address 0x4 - core index']
  #allocation1 [shape = 'u32[144,128]{1,0:T(1,128)}', space=vmem, size = 0x12000, scoped, tag = 'internal scratch']
  %s0 = inlined_call_operand.vmem [shape: f32[2,3,2,128], index: 0, kind: input, shape index: {}]
  %s1 = inlined_call_operand.vmem [shape: f32[3], index: 1, kind: input, shape index: {}]
  %s2 = inlined_call_operand.vmem [shape: f32[3], index: 2, kind: input, shape index: {}]
  %s3 = inlined_call_operand.vmem [shape: f32[2,3,2,128], index: 3, kind: output, shape index: {}]
  %s4 = sld [smem:[#allocation0]]
  $region53: #{mmseg_normalize.1} parent=0
    _
  %s6 = ssub.s32 1, %s4
  %s7 = scalar_select 0, %s6, %s4
  $region1: #{mmseg_normalize.1} parent=0
    #allocation2 [shape = 'u8[512]{0}', space=smem, size = 0x200, scoped, tag = 'input window, operand 1, single buffered']
    #allocation3 [shape = 's32[2]{0}', space=sflag, size = 0x8, scoped, tag = 'scoped memory for mmseg_normalize.1']
    #allocation4 [shape = 'u8[512]{0}', space=smem, size = 0x200, scoped, tag = 'input window, operand 2, single buffered']
    #allocation5 [shape = 's32[1]{0}', space=sflag, size = 0x4, scoped, tag = 'scoped memory for mmseg_normalize.1']
    %8 = vsyncpa [#allocation3], 0
    %9 = vsyncpa [#allocation5], 0
    loop: start=0, step=1, limit=4
    $region2: #{mmseg_normalize.1} parent=1 // loop_pre_header
      _
    $region3: #{mmseg_normalize.1} parent=1 // loop_header
      %s11 = sphi 0, %s15
      %p12 = scmp.ge.s32.totalorder %s11, 4
      %s18 = sphi 0, %s30
      %s19 = sphi 0, %s26
      %s20 = sphi 0, %s18
      %s21 = sphi 0, %s19
      %s22 = sphi 0, %s20
      %s23 = sphi 0, %s21
      %s35 = sphi 0, %s37
      %s38 = sphi 0, %s35
      %s39 = sphi 0, %s38
      %s55 = sphi 0, %s39
      %s59 = sphi 0, %s59
      %s61 = sphi 0, %s59
      %s62 = sphi 0, %s61
      %s76 = sphi 0, %s62
      %s80 = sphi 0, %s80
      %s82 = sphi 0, %s80
      %s83 = sphi 0, %s82
      %s97 = sphi 0, %s83
      %s105 = sphi 0, %s107
      %s108 = sphi 0, %s105
      %s109 = sphi 0, %s108
      %s125 = sphi 0, %s109
    $region4: #{mmseg_normalize.1} parent=1 // loop_header_branch
      %14 = sbr.rel (%p12) target = $region8
    $region5: #{mmseg_normalize.1} parent=1 // loop_body
      %s16 = ssub.s32 %s11, 1
      %s17 = ssub.s32 %s11, 2
      %s24 = sadd.s32 1, %s19
      %p25 = scmp.ge.s32.totalorder %s24, 1
      %s26 = scalar_select %p25, 0, %s24
      %s27 = sadd.s32 1, %s18
      %s28 = scalar_select %p25, %s27, %s18
      %p29 = scmp.ge.s32.totalorder %s28, 2
      %s30 = scalar_select %p29, 0, %s28
      %s31 = ssub.s32 %s18, %s30
      %s32 = ssub.s32 %s19, %s26
      %s33 = sor.u32 %s31, %s32
      %p34 = scmp.eq.s32.totalorder %s33, 0
      %s36 = sadd.s32 %s35, 1
      %s37 = scalar_select %p34, %s35, %s36
      %p40 = pneg %p34
      %p41 = scmp.eq.s32.totalorder %s11, 1
      %p42 = por %p40, %p41
      %p43 = scmp.ne.s32.totalorder %s35, %s38
      %p44 = scmp.eq.s32.totalorder %s11, 0
      %p45 = por %p43, %p44
      %p46 = scmp.ne.s32.totalorder %s35, %s38
      %p47 = scmp.eq.s32.totalorder %s16, 1
      %p48 = por %p46, %p47
      %p49 = scmp.ne.s32.totalorder %s38, %s39
      %p50 = scmp.eq.s32.totalorder %s16, 0
      %p51 = por %p49, %p50
      %p52 = scmp.ne.s32.totalorder %s38, %s39
      %p53 = scmp.eq.s32.totalorder %s17, 1
      %p54 = por %p52, %p53
      %p56 = scmp.ne.s32.totalorder %s39, %s55
      %p57 = scmp.eq.s32.totalorder %s17, 0
      %p58 = por %p56, %p57
      %s60 = sadd.s32 %s59, 1
      %p63 = scmp.eq.s32.totalorder %s11, 1
      %p64 = scmp.ne.s32.totalorder %s59, %s61
      %p65 = scmp.eq.s32.totalorder %s11, 0
      %p66 = por %p64, %p65
      %p67 = scmp.ne.s32.totalorder %s59, %s61
      %p68 = scmp.eq.s32.totalorder %s16, 1
      %p69 = por %p67, %p68
      %p70 = scmp.ne.s32.totalorder %s61, %s62
      %p71 = scmp.eq.s32.totalorder %s16, 0
      %p72 = por %p70, %p71
      %p73 = scmp.ne.s32.totalorder %s61, %s62
      %p74 = scmp.eq.s32.totalorder %s17, 1
      %p75 = por %p73, %p74
      %p77 = scmp.ne.s32.totalorder %s62, %s76
      %p78 = scmp.eq.s32.totalorder %s17, 0
      %p79 = por %p77, %p78
      %s81 = sadd.s32 %s80, 1
      %p84 = scmp.eq.s32.totalorder %s11, 1
      %p85 = scmp.ne.s32.totalorder %s80, %s82
      %p86 = scmp.eq.s32.totalorder %s11, 0
      %p87 = por %p85, %p86
      %p88 = scmp.ne.s32.totalorder %s80, %s82
      %p89 = scmp.eq.s32.totalorder %s16, 1
      %p90 = por %p88, %p89
      %p91 = scmp.ne.s32.totalorder %s82, %s83
      %p92 = scmp.eq.s32.totalorder %s16, 0
      %p93 = por %p91, %p92
      %p94 = scmp.ne.s32.totalorder %s82, %s83
      %p95 = scmp.eq.s32.totalorder %s17, 1
      %p96 = por %p94, %p95
      %p98 = scmp.ne.s32.totalorder %s83, %s97
      %p99 = scmp.eq.s32.totalorder %s17, 0
      %p100 = por %p98, %p99
      %s101 = ssub.s32 %s18, %s30
      %s102 = ssub.s32 %s19, %s26
      %s103 = sor.u32 %s101, %s102
      %p104 = scmp.eq.s32.totalorder %s103, 0
      %s106 = sadd.s32 %s105, 1
      %s107 = scalar_select %p104, %s105, %s106
      %p110 = pneg %p104
      %p111 = scmp.eq.s32.totalorder %s11, 1
      %p112 = por %p110, %p111
      %p113 = scmp.ne.s32.totalorder %s105, %s108
      %p114 = scmp.eq.s32.totalorder %s11, 0
      %p115 = por %p113, %p114
      %p116 = scmp.ne.s32.totalorder %s105, %s108
      %p117 = scmp.eq.s32.totalorder %s16, 1
      %p118 = por %p116, %p117
      %p119 = scmp.ne.s32.totalorder %s108, %s109
      %p120 = scmp.eq.s32.totalorder %s16, 0
      %p121 = por %p119, %p120
      %p122 = scmp.ne.s32.totalorder %s108, %s109
      %p123 = scmp.eq.s32.totalorder %s17, 1
      %p124 = por %p122, %p123
      %p126 = scmp.ne.s32.totalorder %s109, %s125
      %p127 = scmp.eq.s32.totalorder %s17, 0
      %p128 = por %p126, %p127
      %p129 = scmp.le.s32.totalorder 1, %s11
      %p130 = scmp.lt.s32.totalorder %s11, 3
      %p131 = pnand %p129, %p130
      %p132 = pneg %p131
      // Predicated region
      $region9: #{mmseg_normalize.1} parent=5 // pred_check
        _
      $region10: #{mmseg_normalize.1} parent=5 // pred_check_branch
        %134 = sbr.rel (%p131) target = $region12
      $region11: #{mmseg_normalize.1} parent=5 // pred_region
        %s135 = ssub.s32 %s11, 1
        // Predicated region
        $region13: #{mmseg_normalize.1} parent=11 // pred_check
          %p136 = pneg %p72
        $region14: #{mmseg_normalize.1} parent=11 // pred_check_branch
          %138 = sbr.rel (%p136) target = $region16
        $region15: #{mmseg_normalize.1} parent=11 // pred_region
          %s140 = ssub.s32 16, 16
          %141 = vsyncadd [#allocation3], %s140
          %s143 = sshll.u32 %s1, 4
          %s144 = int_to_ptr.vmem [resolvable:$true] %s143
          %146 = dma.vmem_to_smem %s144, 16, [#allocation2], [#allocation3]
        $region16: #{mmseg_normalize.1} parent=11 // pred_fallthru
          _
        // Predicated region
        $region17: #{mmseg_normalize.1} parent=11 // pred_check
          %p147 = pneg %p93
        $region18: #{mmseg_normalize.1} parent=11 // pred_check_branch
          %149 = sbr.rel (%p147) target = $region20
        $region19: #{mmseg_normalize.1} parent=11 // pred_region
          %s151 = ssub.s32 16, 16
          %152 = vsyncadd [#allocation5], %s151
          %s154 = sshll.u32 %s2, 4
          %s155 = int_to_ptr.vmem [resolvable:$true] %s154
          %157 = dma.vmem_to_smem %s155, 16, [#allocation4], [#allocation5]
        $region20: #{mmseg_normalize.1} parent=11 // pred_fallthru
          _
      $region12: #{mmseg_normalize.1} parent=5 // pred_fallthru
        _
      %p158 = scmp.lt.s32.totalorder %s11, 2
      // Predicated region
      $region21: #{mmseg_normalize.1} parent=5 // pred_check
        %p159 = pneg %p158
      $region22: #{mmseg_normalize.1} parent=5 // pred_check_branch
        %161 = sbr.rel (%p159) target = $region24
      $region23: #{mmseg_normalize.1} parent=5 // pred_region
        // Predicated region
        $region25: #{mmseg_normalize.1} parent=23 // pred_check
          %p162 = pneg %p45
        $region26: #{mmseg_normalize.1} parent=23 // pred_check_branch
          %164 = sbr.rel (%p162) target = $region28
        $region27: #{mmseg_normalize.1} parent=23 // pred_region
          %p165 = scmp.lt.s32.totalorder %s18, 1
          %s166 = scalar_select %p165, %s18, 1
          %p167 = scmp.lt.s32.totalorder %s19, 0
          %s168 = scalar_select %p167, %s19, 0
          %s169 = smul.addr %s166, 3
          %s170 = sadd.s32 %s168, %s169
          %s171 = smul.addr %s170, 2
          %s172 = scalar_lea.vmem %s0, %s171
        $region28: #{mmseg_normalize.1} parent=23 // pred_fallthru
          _
      $region24: #{mmseg_normalize.1} parent=5 // pred_fallthru
        _
      %p173 = scmp.le.s32.totalorder 1, %s11
      %p174 = scmp.lt.s32.totalorder %s11, 3
      %p175 = pnand %p173, %p174
      %p176 = pneg %p175
      // Predicated region
      $region29: #{mmseg_normalize.1} parent=5 // pred_check
        _
      $region30: #{mmseg_normalize.1} parent=5 // pred_check_branch
        %178 = sbr.rel (%p175) target = $region32
      $region31: #{mmseg_normalize.1} parent=5 // pred_region
        %s179 = ssub.s32 %s11, 1
        // Predicated region
        $region33: #{mmseg_normalize.1} parent=31 // pred_check
          %p180 = pneg %p72
        $region34: #{mmseg_normalize.1} parent=31 // pred_check_branch
          %182 = sbr.rel (%p180) target = $region36
        $region35: #{mmseg_normalize.1} parent=31 // pred_region
          %183 = dma.done [#allocation3], 16
        $region36: #{mmseg_normalize.1} parent=31 // pred_fallthru
          _
        // Predicated region
        $region37: #{mmseg_normalize.1} parent=31 // pred_check
          %p184 = pneg %p93
        $region38: #{mmseg_normalize.1} parent=31 // pred_check_branch
          %186 = sbr.rel (%p184) target = $region40
        $region39: #{mmseg_normalize.1} parent=31 // pred_region
          %187 = dma.done [#allocation5], 16
        $region40: #{mmseg_normalize.1} parent=31 // pred_fallthru
          _
        %188 = sfence
        %p189 = scmp.lt.s32.totalorder %s20, 1
        %s190 = scalar_select %p189, %s20, 1
        %p191 = scmp.lt.s32.totalorder %s21, 0
        %s192 = scalar_select %p191, %s21, 0
        %s193 = smul.addr %s190, 3
        %s194 = sadd.s32 %s192, %s193
        %s195 = smul.addr %s194, 2
        %s196 = scalar_lea.vmem %s0, %s195
        %p197 = pneg %p51
        %p198 = pneg %p48
        %p199 = pneg %p72
        %p200 = pneg %p69
        %p201 = pneg %p93
        %p202 = pneg %p90
        %p203 = pneg %p121
        %p204 = pneg %p118
        %p205 = scmp.lt.s32.totalorder %s20, 1
        %s206 = scalar_select %p205, %s20, 1
        %p207 = scmp.lt.s32.totalorder %s21, 0
        %s208 = scalar_select %p207, %s21, 0
        %s209 = smul.addr %s206, 3
        %s210 = sadd.s32 %s208, %s209
        %s211 = smul.addr %s210, 2
        %s212 = scalar_lea.vmem %s3, %s211
        %p213 = scmp.lt.s32.totalorder %s20, 1
        %s214 = scalar_select %p213, %s20, 1
        %p215 = scmp.lt.s32.totalorder %s21, 0
        %s216 = scalar_select %p215, %s21, 0
        %s217 = smul.addr %s214, 3
        %s218 = sadd.s32 %s216, %s217
        %s219 = smul.addr %s218, 2
        %s220 = scalar_lea.vmem %s0, %s219
        %p221 = scmp.lt.s32.totalorder %s20, 1
        %s222 = scalar_select %p221, %s20, 1
        %p223 = scmp.lt.s32.totalorder %s21, 0
        %s224 = scalar_select %p223, %s21, 0
        %s225 = smul.addr %s222, 3
        %s226 = sadd.s32 %s224, %s225
        %s227 = smul.addr %s226, 2
        %s228 = scalar_lea.vmem %s3, %s227
        %v229 = vld [vmem:[%s220] sm:$0x3]
        %s230 = sld [smem:[#allocation2]]
        %v231 = vstv %s230
        %v232 = vsub.f32 %v229, %v231
        %s233 = sld [smem:[#allocation4]]
        %v234 = vstv %s233
        %v235 = vmul.f32 %v232, %v234
        %236 = vst [vmem:[%s228] sm:$0x3] %v235
        %s237 = scalar_lea.vmem %s220, 2
        %v238 = vld [vmem:[%s237] sm:$0x3]
        %s239 = sld [smem:[#allocation2 + $0x1]]
        %v240 = vstv %s239
        %v241 = vsub.f32 %v238, %v240
        %s242 = sld [smem:[#allocation4 + $0x1]]
        %v243 = vstv %s242
        %v244 = vmul.f32 %v241, %v243
        %s245 = scalar_lea.vmem %s228, 2
        %246 = vst [vmem:[%s245] sm:$0x3] %v244
        %s247 = scalar_lea.vmem %s220, 4
        %v248 = vld [vmem:[%s247] sm:$0x3]
        %s249 = sld [smem:[#allocation2 + $0x2]]
        %v250 = vstv %s249
        %v251 = vsub.f32 %v248, %v250
        %s252 = sld [smem:[#allocation4 + $0x2]]
        %v253 = vstv %s252
        %v254 = vmul.f32 %v251, %v253
        %s255 = scalar_lea.vmem %s228, 4
        %256 = vst [vmem:[%s255] sm:$0x3] %v254
        %p257 = scmp.lt.s32.totalorder %s20, 1
        %s258 = scalar_select %p257, %s20, 1
        %p259 = scmp.lt.s32.totalorder %s21, 0
        %s260 = scalar_select %p259, %s21, 0
        %s261 = smul.addr %s258, 3
        %s262 = sadd.s32 %s260, %s261
        %s263 = smul.addr %s262, 2
        %s264 = scalar_lea.vmem %s3, %s263
        // Predicated region
        $region41: #{mmseg_normalize.1} parent=31 // pred_check
          %p265 = pneg %p118
        $region42: #{mmseg_normalize.1} parent=31 // pred_check_branch
          %267 = sbr.rel (%p265) target = $region44
        $region43: #{mmseg_normalize.1} parent=31 // pred_region
          _
        $region44: #{mmseg_normalize.1} parent=31 // pred_fallthru
          _
      $region32: #{mmseg_normalize.1} parent=5 // pred_fallthru
        _
      %p268 = scmp.le.s32.totalorder 2, %s11
      // Predicated region
      $region45: #{mmseg_normalize.1} parent=5 // pred_check
        %p269 = pneg %p268
      $region46: #{mmseg_normalize.1} parent=5 // pred_check_branch
        %271 = sbr.rel (%p269) target = $region48
      $region47: #{mmseg_normalize.1} parent=5 // pred_region
        %s272 = ssub.s32 %s11, 2
        // Predicated region
        $region49: #{mmseg_normalize.1} parent=47 // pred_check
          %p273 = pneg %p124
        $region50: #{mmseg_normalize.1} parent=47 // pred_check_branch
          %275 = sbr.rel (%p273) target = $region52
        $region51: #{mmseg_normalize.1} parent=47 // pred_region
          %p276 = scmp.lt.s32.totalorder %s22, 1
          %s277 = scalar_select %p276, %s22, 1
          %p278 = scmp.lt.s32.totalorder %s23, 0
          %s279 = scalar_select %p278, %s23, 0
          %s280 = smul.addr %s277, 3
          %s281 = sadd.s32 %s279, %s280
          %s282 = smul.addr %s281, 2
          %s283 = scalar_lea.vmem %s3, %s282
        $region52: #{mmseg_normalize.1} parent=47 // pred_fallthru
          _
      $region48: #{mmseg_normalize.1} parent=5 // pred_fallthru
        _
    $region6: #{mmseg_normalize.1} parent=1 // loop_footer
      %s15 = sadd.s32 1, %s11
    $region7: #{mmseg_normalize.1} parent=1 // loop_footer_branch
      %10 = sbr.rel target = $region3
    $region8: #{mmseg_normalize.1} parent=1 // loop_exit
      _
    %284 = vsyncpa [#allocation3], 1
    %s285 = scalar_lea.sflag [#allocation3], 1
    %286 = vsyncpa %s285, 1
    %287 = vsyncpa [#allocation5], 1

</llo_original>
